<compile_context>
chip_gen: v7x
topology: tpu7x:2x2x1
jax: 0.10.0
libtpu: 0.0.40
codegen_flags: <defaults>
</compile_context>

<pallas_src>
import functools
import math

import jax
import jax.numpy as jnp
from jax.experimental import pallas as pl
from jax.experimental.pallas import tpu as pltpu


def _round_up(v, m):
    return ((v + m - 1) // m) * m


def _physical_vmem_bytes():
    """Per-TensorCore VMEM capacity; falls back to the v7x 64 MiB floor."""
    try:
        cap = int(pltpu.get_tpu_info().vmem_capacity_bytes)
        if cap > 0:
            return cap
    except Exception:
        pass
    return 64 << 20


# ----------------------------------------------------------------------------
# Shared epilogue: LayerNorm (over the real OUT width) + exact-erf GELU, in f32.
# ----------------------------------------------------------------------------
def _ln_gelu(y, gamma, beta, out_real, out_pad, eps):
    # Padded columns of y are exactly zero (zero-padded W and bias), so the
    # plain sum already gives the correct mean; the variance masks padded lanes.
    inv_n = jnp.float32(1.0 / out_real)
    mean = jnp.sum(y, axis=-1, keepdims=True) * inv_n
    yc = y - mean
    if out_pad != out_real:
        lane = jax.lax.broadcasted_iota(jnp.int32, y.shape, 1)
        mask = (lane < out_real).astype(jnp.float32)
        var = jnp.sum(yc * yc * mask, axis=-1, keepdims=True) * inv_n
    else:
        var = jnp.sum(yc * yc, axis=-1, keepdims=True) * inv_n
    yn = yc * jax.lax.rsqrt(var + jnp.float32(eps))
    yn = yn * gamma + beta
    # Exact erf GELU (torch.nn.functional.gelu, approximate='none').
    return 0.5 * yn * (1.0 + jax.lax.erf(yn * jnp.float32(1.0 / math.sqrt(2.0))))


# ----------------------------------------------------------------------------
# Kernels
# ----------------------------------------------------------------------------
def fclayer_resident_kernel(x_ref, w_ref, b_ref, gamma_ref, beta_ref, o_ref,
                            *, out_real, out_pad, eps):
    """num_k == 1 path: whole weight resident in VMEM, no accumulator scratch."""
    y = jnp.dot(x_ref[...], w_ref[...],
                preferred_element_type=jnp.float32) + b_ref[...]
    o_ref[...] = _ln_gelu(y, gamma_ref[...], beta_ref[...],
                          out_real, out_pad, eps).astype(o_ref.dtype)


def fclayer_ktiled_kernel(x_ref, w_ref, b_ref, gamma_ref, beta_ref, o_ref,
                          acc_ref, *, out_real, out_pad, eps):
    """K-tiled path: f32 VMEM accumulator, LN+GELU epilogue on last K step."""
    k = pl.program_id(1)

    @pl.when(k == 0)
    def _init():
        acc_ref[...] = jnp.zeros_like(acc_ref)

    acc_ref[...] += jnp.dot(x_ref[...], w_ref[...],
                            preferred_element_type=jnp.float32)

    @pl.when(k == pl.num_programs(1) - 1)
    def _finalize():
        y = acc_ref[...] + b_ref[...]
        o_ref[...] = _ln_gelu(y, gamma_ref[...], beta_ref[...],
                              out_real, out_pad, eps).astype(o_ref.dtype)


# ----------------------------------------------------------------------------
# Tile selection
# ----------------------------------------------------------------------------
def _batch_tile_candidates(B):
    b8 = _round_up(max(B, 8), 8)
    cands = {min(c, b8) for c in (b8, 1024, 768, 512, 384, 256, 128, 64, 32, 16, 8)}

    def waste(tb):
        return _round_up(B, tb) - B

    # Minimize padded (thrown-away) rows first, then prefer the largest tile:
    # fewer grid steps and fewer weight re-fetches when K-tiled.
    return sorted(cands, key=lambda tb: (waste(tb), -tb))


def _k_tile_candidates(in_pad):
    n = in_pad // 128
    tks = {in_pad // d for d in range(1, n + 1) if n % d == 0}
    return sorted(tks, reverse=True)   # largest (fewest K steps) first


def _select_tiles(B, in_pad, out_pad, op_size, out_size, vmem_budget):
    """Return (tile_b, tile_k). Prefers whole-weight VMEM residency."""
    w_bytes = in_pad * out_pad * op_size
    consts = 3 * out_pad * 4
    # Pass 1: resident weight (DMA'd exactly once), no accumulator scratch.
    for tb in _batch_tile_candidates(B):
        need = (2 * tb * in_pad * op_size        # x (double-buffered)
                + w_bytes                        # W (single-buffered, resident)
                + 2 * tb * out_pad * out_size    # output (double-buffered)
                + consts)
        if need <= vmem_budget:
            return tb, in_pad
    # Pass 2: K-tiled accumulation. W is re-streamed once per batch tile, so
    # keep tile_b and tile_k as large as VMEM allows.
    for tb in _batch_tile_candidates(B):
        for tk in _k_tile_candidates(in_pad):
            need = (2 * tb * tk * op_size
                    + 2 * tk * out_pad * op_size
                    + 2 * tb * out_pad * out_size
                    + tb * out_pad * 4           # f32 accumulator scratch
                    + consts)
            if need <= vmem_budget:
                return tb, tk
    return 8, 128


# ----------------------------------------------------------------------------
# Wrapper
# ----------------------------------------------------------------------------
def fclayer_forward(x, w, b, gamma, beta, *, tile_b=None, tile_k=None,
                    use_bf16_matmul=True, out_dtype=None):
    """x: (B, IN). w: (IN, OUT) (transposed vs. nn.Linear). Returns (B, OUT)."""
    B, IN = x.shape
    assert w.shape[0] == IN
    OUT = w.shape[1]
    out_dtype = x.dtype if out_dtype is None else out_dtype

    op_dtype = jnp.bfloat16 if use_bf16_matmul else jnp.float32
    op_size = jnp.dtype(op_dtype).itemsize
    out_size = jnp.dtype(out_dtype).itemsize
    eps = 1e-6

    # Pad feature dims to lane multiples (128): lane-dense stores and aligned
    # MXU tiles. Batch padded to a whole number of tiles.
    IN_pad = _round_up(IN, 128)
    OUT_pad = _round_up(OUT, 128)

    phys_vmem = _physical_vmem_bytes()
    vmem_budget = int(phys_vmem * 0.82)   # headroom for compiler scratch/sems

    auto_tb, auto_tk = _select_tiles(B, IN_pad, OUT_pad, op_size, out_size,
                                     vmem_budget)
    tile_b = auto_tb if tile_b is None else max(8, _round_up(int(tile_b), 8))
    if tile_k is None:
        tile_k = auto_tk
    else:
        tile_k = min(_round_up(int(tile_k), 128), IN_pad)
        if IN_pad % tile_k:
            tile_k = 128
    B_pad = _round_up(max(B, tile_b), tile_b)
    num_b = B_pad // tile_b
    num_k = IN_pad // tile_k

    # Pad / cast operands only when actually needed (zeros leave the matmul,
    # bias and LN mean unchanged).
    # TODO(synk): hoist the one-time weight pad/cast out of the per-call path
    # (pre-padded params entry point) when this layer is called repeatedly.
    def _pad2(a, rows, cols, dtype):
        a = a.astype(dtype)
        if a.shape == (rows, cols):
            return a
        return jnp.zeros((rows, cols), dtype).at[:a.shape[0], :a.shape[1]].set(a)

    x_p = _pad2(x, B_pad, IN_pad, op_dtype)
    w_p = _pad2(w, IN_pad, OUT_pad, op_dtype)
    b_p = _pad2(b.reshape(1, -1), 1, OUT_pad, jnp.float32)
    g_p = _pad2(gamma.reshape(1, -1), 1, OUT_pad, jnp.float32)
    bt_p = _pad2(beta.reshape(1, -1), 1, OUT_pad, jnp.float32)

    single = {"pipeline_mode": pl.Buffered(1)}   # constant-index blocks

    if num_k == 1:
        # Whole weight resident in VMEM, fetched from HBM exactly once.
        kernel = functools.partial(fclayer_resident_kernel,
                                   out_real=OUT, out_pad=OUT_pad, eps=eps)
        grid = (num_b,)
        in_specs = [
            pl.BlockSpec((tile_b, IN_pad), lambda i: (i, 0)),                   # x
            pl.BlockSpec((IN_pad, OUT_pad), lambda i: (0, 0), **single),        # W
            pl.BlockSpec((1, OUT_pad), lambda i: (0, 0), **single),             # bias
            pl.BlockSpec((1, OUT_pad), lambda i: (0, 0), **single),             # gamma
            pl.BlockSpec((1, OUT_pad), lambda i: (0, 0), **single),             # beta
        ]
        out_specs = pl.BlockSpec((tile_b, OUT_pad), lambda i: (i, 0))
        scratch_shapes = []
        dim_sem = ("parallel",)
        vmem_need = (2 * tile_b * IN_pad * op_size + IN_pad * OUT_pad * op_size
                     + 2 * tile_b * OUT_pad * out_size + 3 * OUT_pad * 4)
        w_hbm_bytes = IN_pad * OUT_pad * op_size
    else:
        kernel = functools.partial(fclayer_ktiled_kernel,
                                   out_real=OUT, out_pad=OUT_pad, eps=eps)
        grid = (num_b, num_k)
        in_specs = [
            pl.BlockSpec((tile_b, tile_k), lambda i, k: (i, k)),                # x
            pl.BlockSpec((tile_k, OUT_pad), lambda i, k: (k, 0)),               # W
            pl.BlockSpec((1, OUT_pad), lambda i, k: (0, 0), **single),          # bias
            pl.BlockSpec((1, OUT_pad), lambda i, k: (0, 0), **single),          # gamma
            pl.BlockSpec((1, OUT_pad), lambda i, k: (0, 0), **single),          # beta
        ]
        out_specs = pl.BlockSpec((tile_b, OUT_pad), lambda i, k: (i, 0))
        scratch_shapes = [pltpu.VMEM((tile_b, OUT_pad), jnp.float32)]
        dim_sem = ("parallel", "arbitrary")
        vmem_need = (2 * tile_b * tile_k * op_size
                     + 2 * tile_k * OUT_pad * op_size
                     + 2 * tile_b * OUT_pad * out_size
                     + tile_b * OUT_pad * 4 + 3 * OUT_pad * 4)
        # W is re-streamed from HBM once per batch tile when K-tiled.
        w_hbm_bytes = num_b * IN_pad * OUT_pad * op_size

    vmem_limit = int(max(32 << 20,
                         min(vmem_need + (8 << 20), int(phys_vmem * 0.875))))

    cost = pl.CostEstimate(
        flops=2 * B_pad * IN_pad * OUT_pad,
        transcendentals=B_pad * OUT_pad,
        bytes_accessed=(op_size * B_pad * IN_pad
                        + w_hbm_bytes
                        + out_size * B_pad * OUT_pad),
    )

    out = pl.pallas_call(
        kernel,
        out_shape=jax.ShapeDtypeStruct((B_pad, OUT_pad), out_dtype),
        grid_spec=pltpu.PrefetchScalarGridSpec(
            num_scalar_prefetch=0,
            grid=grid,
            in_specs=in_specs,
            out_specs=out_specs,
            scratch_shapes=scratch_shapes,
        ),
        compiler_params=pltpu.CompilerParams(
            dimension_semantics=dim_sem,
            vmem_limit_bytes=vmem_limit,
        ),
        cost_estimate=cost,
    )(x_p, w_p, b_p, g_p, bt_p)

    if B_pad == B and OUT_pad == OUT:
        return out
    return out[:B, :OUT]


# ----------------------------------------------------------------------------
# Params / reference
# ----------------------------------------------------------------------------
def init_params(key, in_feature, out_feature):
    """Mirror nn.Linear default init; LayerNorm weight=1, bias=0."""
    k_w, k_b = jax.random.split(key)
    bound = 1.0 / math.sqrt(in_feature)
    # PyTorch weight is (out, in); stored transposed (in, out) for the kernel.
    w = jax.random.uniform(k_w, (in_feature, out_feature), jnp.float32, -bound, bound)
    b = jax.random.uniform(k_b, (out_feature,), jnp.float32, -bound, bound)
    gamma = jnp.ones((out_feature,), jnp.float32)
    beta = jnp.zeros((out_feature,), jnp.float32)
    return w, b, gamma, beta


def reference_forward(x, w, b, gamma, beta, matmul_dtype=None):
    """Pure-JAX reference of FCLayer(in, out, activation='gelu', is_normalized=True)."""
    if matmul_dtype is not None:
        y = jnp.dot(x.astype(matmul_dtype), w.astype(matmul_dtype),
                    preferred_element_type=jnp.float32)
    else:
        y = jnp.dot(x, w, precision=jax.lax.Precision.HIGHEST)
    y = y + b
    mean = jnp.mean(y, axis=-1, keepdims=True)
    var = jnp.mean((y - mean) ** 2, axis=-1, keepdims=True)
    y = (y - mean) / jnp.sqrt(var + 1e-6)
    y = y * gamma + beta
    return 0.5 * y * (1.0 + jax.lax.erf(y / math.sqrt(2.0)))


if __name__ == "__main__":
    key = jax.random.PRNGKey(0)
    k_x, k_p, k_x2, k_p2 = jax.random.split(key, 4)

    # Small shape consistent with FCLayer: batch of feature vectors.
    B, IN, OUT = 8, 32, 64
    x = jax.random.normal(k_x, (B, IN), jnp.float32)
    w, b, gamma, beta = init_params(k_p, IN, OUT)

    # Exact-numerics path (f32 MXU operands, resident-weight kernel).
    out = jax.block_until_ready(
        fclayer_forward(x, w, b, gamma, beta, use_bf16_matmul=False))
    ref = reference_forward(x, w, b, gamma, beta)
    assert out.shape == (B, OUT)
    assert jnp.allclose(out, ref, atol=1e-5, rtol=1e-5), "mismatch (f32 path)"

    # Default fast path (bf16 operands, f32 accumulation/epilogue): ragged
    # batch, padded OUT, forced K-tiling to exercise the accumulator kernel.
    B2, IN2, OUT2 = 40, 256, 192
    x2 = jax.random.normal(k_x2, (B2, IN2), jnp.float32)
    w2, b2, g2, bt2 = init_params(k_p2, IN2, OUT2)
    out2 = jax.block_until_ready(
        fclayer_forward(x2, w2, b2, g2, bt2, tile_b=16, tile_k=128))
    ref2_bf16 = reference_forward(x2, w2, b2, g2, bt2, matmul_dtype=jnp.bfloat16)
    ref2_f32 = reference_forward(x2, w2, b2, g2, bt2)
    assert out2.shape == (B2, OUT2)
    assert jnp.allclose(out2, ref2_bf16, atol=2e-3, rtol=2e-3), "mismatch (bf16 k-tiled)"
    assert jnp.allclose(out2, ref2_f32, atol=6e-2, rtol=6e-2), "mismatch vs f32 ref"

    # Same shape through the auto-tiler (picks the resident-weight bf16 path).
    out3 = jax.block_until_ready(fclayer_forward(x2, w2, b2, g2, bt2))
    assert out3.shape == (B2, OUT2)
    assert jnp.allclose(out3, ref2_bf16, atol=2e-3, rtol=2e-3), "mismatch (resident)"

    print("KERNEL_OK")
</pallas_src>

<mosaic_0001>
module attributes {stable_mosaic.version = 11 : i64} {
  func.func @fclayer_resident_kernel(%arg0: i32, %arg1: memref<8x128xf32, #tpu.memory_space<vmem>>, %arg2: memref<128x128xf32, #tpu.memory_space<vmem>>, %arg3: memref<1x128xf32, #tpu.memory_space<vmem>>, %arg4: memref<1x128xf32, #tpu.memory_space<vmem>>, %arg5: memref<1x128xf32, #tpu.memory_space<vmem>>, %arg6: memref<8x128xf32, #tpu.memory_space<vmem>>) attributes {dimension_semantics = [#tpu.dimension_semantics<parallel>], iteration_bounds = array<i64: 1>, scalar_prefetch = 0 : i64, scratch_operands = 0 : i64, tpu.core_type = #tpu.core_type<tc>, window_params = [{transform_indices = @transform_0, window_bounds = array<i64: 8, 128>}, {pipeline_mode = #tpu.pipeline_mode<synchronous>, transform_indices = @transform_1, window_bounds = array<i64: 128, 128>}, {pipeline_mode = #tpu.pipeline_mode<synchronous>, transform_indices = @transform_2, window_bounds = array<i64: 1, 128>}, {pipeline_mode = #tpu.pipeline_mode<synchronous>, transform_indices = @transform_3, window_bounds = array<i64: 1, 128>}, {pipeline_mode = #tpu.pipeline_mode<synchronous>, transform_indices = @transform_4, window_bounds = array<i64: 1, 128>}, {transform_indices = @transform_5, window_bounds = array<i64: 8, 128>}]} {
    %c0 = arith.constant 0 : index
    %c0_0 = arith.constant 0 : index
    %0 = vector.load %arg1[%c0, %c0_0] : memref<8x128xf32, #tpu.memory_space<vmem>>, vector<8x128xf32>
    %c0_1 = arith.constant 0 : index
    %c0_2 = arith.constant 0 : index
    %1 = vector.load %arg2[%c0_1, %c0_2] : memref<128x128xf32, #tpu.memory_space<vmem>>, vector<128x128xf32>
    %cst = arith.constant dense<0.000000e+00> : vector<8x128xf32>
    %2 = tpu.matmul %0, %1, %cst {dimension_numbers = #tpu.dot_dimension_numbers<[1], [0], [0], [1], [0, 0, 1, 1], [], []>} : vector<8x128xf32>, vector<128x128xf32>, vector<8x128xf32> -> vector<8x128xf32>
    %c0_3 = arith.constant 0 : index
    %c0_4 = arith.constant 0 : index
    %3 = vector.load %arg3[%c0_3, %c0_4] : memref<1x128xf32, #tpu.memory_space<vmem>>, vector<1x128xf32>
    %4 = vector.broadcast %3 : vector<1x128xf32> to vector<8x128xf32>
    %5 = arith.addf %2, %4 : vector<8x128xf32>
    %c0_5 = arith.constant 0 : index
    %c0_6 = arith.constant 0 : index
    %6 = vector.load %arg4[%c0_5, %c0_6] : memref<1x128xf32, #tpu.memory_space<vmem>>, vector<1x128xf32>
    %c0_7 = arith.constant 0 : index
    %c0_8 = arith.constant 0 : index
    %7 = vector.load %arg5[%c0_7, %c0_8] : memref<1x128xf32, #tpu.memory_space<vmem>>, vector<1x128xf32>
    %cst_9 = arith.constant dense<0.000000e+00> : vector<8xf32>
    %8 = vector.multi_reduction <add>, %5, %cst_9 [1] : vector<8x128xf32> to vector<8xf32>
    %9 = vector.shape_cast %8 : vector<8xf32> to vector<8x1xf32>
    %cst_10 = arith.constant 1.562500e-02 : f32
    %10 = vector.broadcast %cst_10 : f32 to vector<8x1xf32>
    %11 = arith.mulf %9, %10 : vector<8x1xf32>
    %12 = vector.broadcast %11 : vector<8x1xf32> to vector<8x128xf32>
    %13 = arith.subf %5, %12 : vector<8x128xf32>
    %14 = tpu.iota {dimensions = array<i32: 1>} : vector<8x128xi32>
    %c64_i32 = arith.constant 64 : i32
    %15 = vector.broadcast %c64_i32 : i32 to vector<8x128xi32>
    %16 = arith.cmpi slt, %14, %15 : vector<8x128xi32>
    %17 = arith.extui %16 : vector<8x128xi1> to vector<8x128xi32>
    %18 = arith.sitofp %17 : vector<8x128xi32> to vector<8x128xf32>
    %19 = arith.mulf %13, %13 : vector<8x128xf32>
    %20 = arith.mulf %19, %18 : vector<8x128xf32>
    %cst_11 = arith.constant dense<0.000000e+00> : vector<8xf32>
    %21 = vector.multi_reduction <add>, %20, %cst_11 [1] : vector<8x128xf32> to vector<8xf32>
    %22 = vector.shape_cast %21 : vector<8xf32> to vector<8x1xf32>
    %cst_12 = arith.constant 1.562500e-02 : f32
    %23 = vector.broadcast %cst_12 : f32 to vector<8x1xf32>
    %24 = arith.mulf %22, %23 : vector<8x1xf32>
    %cst_13 = arith.constant 9.99999997E-7 : f32
    %25 = vector.broadcast %cst_13 : f32 to vector<8x1xf32>
    %26 = arith.addf %24, %25 : vector<8x1xf32>
    %27 = math.rsqrt %26 : vector<8x1xf32>
    %28 = vector.broadcast %27 : vector<8x1xf32> to vector<8x128xf32>
    %29 = arith.mulf %13, %28 : vector<8x128xf32>
    %30 = vector.broadcast %6 : vector<1x128xf32> to vector<8x128xf32>
    %31 = arith.mulf %29, %30 : vector<8x128xf32>
    %32 = vector.broadcast %7 : vector<1x128xf32> to vector<8x128xf32>
    %33 = arith.addf %31, %32 : vector<8x128xf32>
    %cst_14 = arith.constant 5.000000e-01 : f32
    %34 = vector.broadcast %cst_14 : f32 to vector<8x128xf32>
    %35 = arith.mulf %34, %33 : vector<8x128xf32>
    %cst_15 = arith.constant 0.707106769 : f32
    %36 = vector.broadcast %cst_15 : f32 to vector<8x128xf32>
    %37 = arith.mulf %33, %36 : vector<8x128xf32>
    %38 = math.erf %37 : vector<8x128xf32>
    %cst_16 = arith.constant 1.000000e+00 : f32
    %39 = vector.broadcast %cst_16 : f32 to vector<8x128xf32>
    %40 = arith.addf %39, %38 : vector<8x128xf32>
    %41 = arith.mulf %35, %40 : vector<8x128xf32>
    %c0_17 = arith.constant 0 : index
    %c0_18 = arith.constant 0 : index
    %42 = vector.load %arg6[%c0_17, %c0_18] : memref<8x128xf32, #tpu.memory_space<vmem>>, vector<8x128xf32>
    tpu.vector_store %arg6[%c0_17, %c0_18], %41 {strides = array<i32>} : memref<8x128xf32, #tpu.memory_space<vmem>>, vector<8x128xf32>,
    return
  }
  func.func @transform_0(%arg0: i32) -> (i32, i32) {
    %c0_i32 = arith.constant 0 : i32
    %c0_i32_0 = arith.constant 0 : i32
    return %arg0, %c0_i32 : i32, i32
  }
  func.func @transform_1(%arg0: i32) -> (i32, i32) {
    %c0_i32 = arith.constant 0 : i32
    %c0_i32_0 = arith.constant 0 : i32
    %c0_i32_1 = arith.constant 0 : i32
    return %c0_i32, %c0_i32_0 : i32, i32
  }
  func.func @transform_2(%arg0: i32) -> (i32, i32) {
    %c0_i32 = arith.constant 0 : i32
    %c0_i32_0 = arith.constant 0 : i32
    %c0_i32_1 = arith.constant 0 : i32
    return %c0_i32, %c0_i32_0 : i32, i32
  }
  func.func @transform_3(%arg0: i32) -> (i32, i32) {
    %c0_i32 = arith.constant 0 : i32
    %c0_i32_0 = arith.constant 0 : i32
    %c0_i32_1 = arith.constant 0 : i32
    return %c0_i32, %c0_i32_0 : i32, i32
  }
  func.func @transform_4(%arg0: i32) -> (i32, i32) {
    %c0_i32 = arith.constant 0 : i32
    %c0_i32_0 = arith.constant 0 : i32
    %c0_i32_1 = arith.constant 0 : i32
    return %c0_i32, %c0_i32_0 : i32, i32
  }
  func.func @transform_5(%arg0: i32) -> (i32, i32) {
    %c0_i32 = arith.constant 0 : i32
    %c0_i32_0 = arith.constant 0 : i32
    return %arg0, %c0_i32 : i32, i32
  }
}

</mosaic_0001>

<llo_original>
// kernel: tpu_custom_call.1
$region0: #{tpu_custom_call.1}
  #allocation0 [shape = 'u32[]', space=smem, size = 0x4, offset = 0x4, fixed_abs, tag = 'smem constant byte address 0x4 - core index']
  #allocation1 [shape = 'u32[144,128]{1,0:T(1,128)}', space=vmem, size = 0x12000, scoped, tag = 'internal scratch']
  %s0 = inlined_call_operand.hbm [shape: f32[8,128], index: 0, kind: input, shape index: {}]
  %s1 = inlined_call_operand.hbm [shape: f32[128,128], index: 1, kind: input, shape index: {}]
  %s2 = inlined_call_operand.vmem [shape: f32[1,128], index: 2, kind: input, shape index: {}]
  %s3 = inlined_call_operand.vmem [shape: f32[1,128], index: 3, kind: input, shape index: {}]
  %s4 = inlined_call_operand.vmem [shape: f32[1,128], index: 4, kind: input, shape index: {}]
  %s5 = inlined_call_operand.hbm [shape: f32[8,128], index: 5, kind: output, shape index: {}]
  %s6 = sld [smem:[#allocation0]]
  $region38: #{tpu_custom_call.1} parent=0
    _
  %s8 = ssub.s32 1, %s6
  %s9 = scalar_select 0, %s8, %s6
  $region1: #{tpu_custom_call.1} parent=0
    #allocation2 [shape = 'u8[4096]{0}', space=vmem, size = 0x1000, scoped, tag = 'input window, operand 0, single buffered']
    #allocation3 [shape = 's32[1]{0}', space=sflag, size = 0x4, scoped, tag = 'scoped memory for tpu_custom_call.1']
    #allocation4 [shape = 's32[1]{0}', space=sflag, size = 0x4, scoped, tag = 'scoped memory for tpu_custom_call.1']
    #allocation5 [shape = 'u8[65536]{0}', space=vmem, size = 0x10000, scoped, tag = 'input window, operand 1, single buffered']
    #allocation6 [shape = 's32[1]{0}', space=sflag, size = 0x4, scoped, tag = 'scoped memory for tpu_custom_call.1']
    #allocation7 [shape = 'u8[4096]{0}', space=vmem, size = 0x1000, scoped, tag = 'output window, operand 0, single buffered']
    %10 = vsyncpa [#allocation3], 0
    %11 = vsyncpa [#allocation6], 0
    %12 = vsyncpa [#allocation4], 0
    // Predicated region
    $region2: #{tpu_custom_call.1} parent=1 // pred_check
      _
    $region3: #{tpu_custom_call.1} parent=1 // pred_check_branch
      %14 = sbr.rel (0) target = $region5
    $region4: #{tpu_custom_call.1} parent=1 // pred_region
      %s16 = ssub.s32 128, 128
      %17 = vsyncadd [#allocation3], %s16
      %s19 = sshll.u32 [#allocation2], 4
      %s20 = int_to_ptr.vmem [resolvable:$true] %s19
      %22 = dma.hbm_to_vmem [thread:$0]  %s0, 128, %s20, [#allocation3]
    $region5: #{tpu_custom_call.1} parent=1 // pred_fallthru
      _
    // Predicated region
    $region6: #{tpu_custom_call.1} parent=1 // pred_check
      _
    $region7: #{tpu_custom_call.1} parent=1 // pred_check_branch
      %24 = sbr.rel (0) target = $region9
    $region8: #{tpu_custom_call.1} parent=1 // pred_region
      %s26 = ssub.s32 2048, 2048
      %27 = vsyncadd [#allocation6], %s26
      %s28 = sshll.u32 [#allocation5], 4
      %s29 = int_to_ptr.vmem [resolvable:$true] %s28
      %34 = dma.hbm_to_vmem [thread:$0]  %s1, 2048, %s29, [#allocation6], 128, 128, 8
    $region9: #{tpu_custom_call.1} parent=1 // pred_fallthru
      _
    // Predicated region
    $region10: #{tpu_custom_call.1} parent=1 // pred_check
      _
    $region11: #{tpu_custom_call.1} parent=1 // pred_check_branch
      %36 = sbr.rel (0) target = $region13
    $region12: #{tpu_custom_call.1} parent=1 // pred_region
      _
    $region13: #{tpu_custom_call.1} parent=1 // pred_fallthru
      _
    // Predicated region
    $region14: #{tpu_custom_call.1} parent=1 // pred_check
      _
    $region15: #{tpu_custom_call.1} parent=1 // pred_check_branch
      %38 = sbr.rel (0) target = $region17
    $region16: #{tpu_custom_call.1} parent=1 // pred_region
      _
    $region17: #{tpu_custom_call.1} parent=1 // pred_fallthru
      _
    // Predicated region
    $region18: #{tpu_custom_call.1} parent=1 // pred_check
      _
    $region19: #{tpu_custom_call.1} parent=1 // pred_check_branch
      %40 = sbr.rel (0) target = $region21
    $region20: #{tpu_custom_call.1} parent=1 // pred_region
      _
    $region21: #{tpu_custom_call.1} parent=1 // pred_fallthru
      _
    // Predicated region
    $region22: #{tpu_custom_call.1} parent=1 // pred_check
      _
    $region23: #{tpu_custom_call.1} parent=1 // pred_check_branch
      %42 = sbr.rel (0) target = $region25
    $region24: #{tpu_custom_call.1} parent=1 // pred_region
      %43 = dma.done [#allocation3], 128
    $region25: #{tpu_custom_call.1} parent=1 // pred_fallthru
      _
    // Predicated region
    $region26: #{tpu_custom_call.1} parent=1 // pred_check
      _
    $region27: #{tpu_custom_call.1} parent=1 // pred_check_branch
      %45 = sbr.rel (0) target = $region29
    $region28: #{tpu_custom_call.1} parent=1 // pred_region
      %46 = dma.done [#allocation6], 2048
    $region29: #{tpu_custom_call.1} parent=1 // pred_fallthru
      _
    %v47 = vld [vmem:[#allocation2] sm:$0xff]
    %v48 = vld [vmem:[#allocation5] sm:$0xff]
    %v49 = vld [vmem:[#allocation5 + $0x8] sm:$0xff]
    %v50 = vld [vmem:[#allocation5 + $0x10] sm:$0xff]
    %v51 = vld [vmem:[#allocation5 + $0x18] sm:$0xff]
    %v52 = vld [vmem:[#allocation5 + $0x20] sm:$0xff]
    %v53 = vld [vmem:[#allocation5 + $0x28] sm:$0xff]
    %v54 = vld [vmem:[#allocation5 + $0x30] sm:$0xff]
    %v55 = vld [vmem:[#allocation5 + $0x38] sm:$0xff]
    %v56 = vld [vmem:[#allocation5 + $0x40] sm:$0xff]
    %v57 = vld [vmem:[#allocation5 + $0x48] sm:$0xff]
    %v58 = vld [vmem:[#allocation5 + $0x50] sm:$0xff]
    %v59 = vld [vmem:[#allocation5 + $0x58] sm:$0xff]
    %v60 = vld [vmem:[#allocation5 + $0x60] sm:$0xff]
    %v61 = vld [vmem:[#allocation5 + $0x68] sm:$0xff]
    %v62 = vld [vmem:[#allocation5 + $0x70] sm:$0xff]
    %v63 = vld [vmem:[#allocation5 + $0x78] sm:$0xff]
    %v64 = vld [vmem:[%s2] sm:$0x1]
    %v66 = vlaneseq
    %v67 = vshrl.u32 %v66, 7
    %v68 = vsub.s32 0, %v67
    %v69 = vrot.slane %v64, %v68
    %71 = vmatprep.subr.mxu0 0.0
    %72 = vmatpush1.msra.mxu0 %v48
    %73 = vmatprep.subr.mxu0 0.0
    %74 = vmatpush1.msra.mxu0 %v49
    %75 = vmatprep.subr.mxu0 0.0
    %76 = vmatpush1.msra.mxu0 %v50
    %77 = vmatprep.subr.mxu0 0.0
    %78 = vmatpush1.msra.mxu0 %v51
    %79 = vmatprep.subr.mxu0 0.0
    %80 = vmatpush1.msra.mxu0 %v52
    %81 = vmatprep.subr.mxu0 0.0
    %82 = vmatpush1.msra.mxu0 %v53
    %83 = vmatprep.subr.mxu0 0.0
    %84 = vmatpush1.msra.mxu0 %v54
    %85 = vmatprep.subr.mxu0 0.0
    %86 = vmatpush1.msra.mxu0 %v55
    %87 = vmatprep.subr.mxu0 0.0
    %88 = vmatpush1.msra.mxu0 %v56
    %89 = vmatprep.subr.mxu0 0.0
    %90 = vmatpush1.msra.mxu0 %v57
    %91 = vmatprep.subr.mxu0 0.0
    %92 = vmatpush1.msra.mxu0 %v58
    %93 = vmatprep.subr.mxu0 0.0
    %94 = vmatpush1.msra.mxu0 %v59
    %95 = vmatprep.subr.mxu0 0.0
    %96 = vmatpush1.msra.mxu0 %v60
    %97 = vmatprep.subr.mxu0 0.0
    %98 = vmatpush1.msra.mxu0 %v61
    %99 = vmatprep.subr.mxu0 0.0
    %100 = vmatpush1.msra.mxu0 %v62
    %101 = vmatprep.subr.mxu0 0.0
    %102 = vmatpush1.msra.mxu0 %v63
    %103 = vmatprep.subr.mxu0 0.0
    %104 = vmatpush1.msra.mxu0 0.0
    %105 = vmatprep.subr.mxu0 0.0
    %106 = vmatpush1.msra.mxu0 0.0
    %107 = vmatprep.subr.mxu0 0.0
    %108 = vmatpush1.msra.mxu0 0.0
    %109 = vmatprep.subr.mxu0 0.0
    %110 = vmatpush1.msra.mxu0 0.0
    %111 = vmatprep.subr.mxu0 0.0
    %112 = vmatpush1.msra.mxu0 0.0
    %113 = vmatprep.subr.mxu0 0.0
    %114 = vmatpush1.msra.mxu0 0.0
    %115 = vmatprep.subr.mxu0 0.0
    %116 = vmatpush1.msra.mxu0 0.0
    %117 = vmatprep.subr.mxu0 0.0
    %118 = vmatpush1.msra.mxu0 0.0
    %119 = vmatprep.subr.mxu0 0.0
    %120 = vmatpush1.msra.mxu0 0.0
    %121 = vmatprep.subr.mxu0 0.0
    %122 = vmatpush1.msra.mxu0 0.0
    %123 = vmatprep.subr.mxu0 0.0
    %124 = vmatpush1.msra.mxu0 0.0
    %125 = vmatprep.subr.mxu0 0.0
    %126 = vmatpush1.msra.mxu0 0.0
    %127 = vmatprep.subr.mxu0 0.0
    %128 = vmatpush1.msra.mxu0 0.0
    %129 = vmatprep.subr.mxu0 0.0
    %130 = vmatpush1.msra.mxu0 0.0
    %131 = vmatprep.subr.mxu0 0.0
    %132 = vmatpush1.msra.mxu0 0.0
    %133 = vmatprep.subr.mxu0 0.0
    %134 = vmatpush1.msra.mxu0 0.0
    %135 = vmatprep.mubr.f32.mxu0 0.0
    %136 = vmatmul.mubr.f32.gmra.mrb[0].mxu0 %v47
    %v137 = vpop.f32.mrb[0].mxu0
    %v138 = vadd.f32 %v69, %v137
    %v139 = vpop.f32.mrb[0].mxu0
    %140 = vdwg.mxu0
    %v141 = vld [vmem:[%s3] sm:$0x1]
    %v142 = vld [vmem:[%s4] sm:$0x1]
    %143 = vadd.xlane.f32.xlu0 %v138
    %v144 = vpop.xlane.xlu0 %143
    %v145 = vmul.f32 %v144, 0.015625
    %v146 = vsub.f32 %v138, %v145
    %v147 = vlaneseq
    %v148 = vand.u32 %v147, 127
    %vm149 = vcmp.lt.s32.totalorder %v148, 64
    %v150 = vsel %vm149, 1, 0
    %v151 = vcvt.s32.f32 %v150
    %v152 = vmul.f32 %v146, %v146
    %v153 = vmul.f32 %v152, %v151
    %154 = vadd.xlane.f32.xlu0 %v153
    %v155 = vpop.xlane.xlu0 %154
    %v156 = vmul.f32 %v155, 0.015625
    %v157 = vadd.f32 %v156, 1e-06
    %v158 = vrsqrt.pop %v157
    %v159 = vmul.f32 %v146, %v158
    %v161 = vlaneseq
    %v162 = vshrl.u32 %v161, 7
    %v163 = vsub.s32 0, %v162
    %v164 = vrot.slane %v141, %v163
    %v166 = vmul.f32 %v159, %v164
    %v168 = vlaneseq
    %v169 = vshrl.u32 %v168, 7
    %v170 = vsub.s32 0, %v169
    %v171 = vrot.slane %v142, %v170
    %v173 = vadd.f32 %v166, %v171
    %v174 = vmul.f32 %v173, 0.5
    %v175 = vmul.f32 %v173, 0.70710677
    %v176 = verf.f32.pop %v175
    %v177 = vadd.f32 %v176, 1.0
    %v178 = vmul.f32 %v174, %v177
    %179 = vst [vmem:[#allocation7] sm:$0xff] %v178
    // Predicated region
    $region30: #{tpu_custom_call.1} parent=1 // pred_check
      _
    $region31: #{tpu_custom_call.1} parent=1 // pred_check_branch
      %181 = sbr.rel (0) target = $region33
    $region32: #{tpu_custom_call.1} parent=1 // pred_region
      %s183 = ssub.s32 128, 128
      %184 = vsyncadd [#allocation4], %s183
      %s186 = sshll.u32 [#allocation7], 4
      %s187 = int_to_ptr.vmem [resolvable:$true] %s186
      %189 = dma.vmem_to_hbm [thread:$0]  %s187, 128, %s5, [#allocation4]
    $region33: #{tpu_custom_call.1} parent=1 // pred_fallthru
      _
    // Predicated region
    $region34: #{tpu_custom_call.1} parent=1 // pred_check
      _
    $region35: #{tpu_custom_call.1} parent=1 // pred_check_branch
      %191 = sbr.rel (0) target = $region37
    $region36: #{tpu_custom_call.1} parent=1 // pred_region
      %192 = dma.done [#allocation4], 128
    $region37: #{tpu_custom_call.1} parent=1 // pred_fallthru
      _
    %193 = vsyncpa [#allocation3], 1
    %194 = vsyncpa [#allocation6], 1
    %195 = vsyncpa [#allocation4], 1

</llo_original>
